<compile_context>
chip_gen: v5e
topology: v5e:2x2
jax: 0.10.0
libtpu: 0.0.40
codegen_flags: <defaults>
</compile_context>

<pallas_src>
import functools

import jax
import jax.numpy as jnp
from jax.experimental import pallas as pl
from jax.experimental.pallas import tpu as pltpu

_LANES = 128
_SUBLANES = 8
_MAX_TILE_ROWS = 2048  # (2048, 128) f32 = 1 MiB per input block


def _charbonnier_sum_kernel(x_ref, y_ref, out_ref, acc_ref, *, eps2, total_rows,
                            needs_mask):
    i = pl.program_id(0)

    @pl.when(i == 0)
    def _():
        acc_ref[...] = jnp.zeros_like(acc_ref)

    diff = x_ref[...].astype(jnp.float32) - y_ref[...].astype(jnp.float32)
    val = jnp.sqrt(diff * diff + jnp.float32(eps2))

    tile_rows, lanes = val.shape
    if needs_mask:
        # Only needed when rows % tile_rows != 0: the tail rows of the last
        # block are unspecified data and must not enter the sum.  Row-level
        # int32 indices cannot overflow (rows = n_elems / 128).
        row_idx = (jax.lax.broadcasted_iota(jnp.int32, (tile_rows, lanes), 0)
                   + i * tile_rows)
        val = jnp.where(row_idx < total_rows, val, jnp.float32(0.0))

    # VPU-only accumulation: collapse the block onto an (8, 128) vreg-shaped
    # accumulator (reshape groups whole vregs -> free; sum over axis 0 is
    # plain vector adds that hide under the DMA).
    acc_ref[...] += val.reshape(tile_rows // _SUBLANES, _SUBLANES, _LANES).sum(axis=0)

    @pl.when(i == pl.num_programs(0) - 1)
    def _():
        out_ref[0, 0] = jnp.sum(acc_ref[...])


def charbonnier_loss(x, y, eps=1e-3):
    assert x.shape == y.shape, (x.shape, y.shape)
    n = x.size

    granule = _SUBLANES * _LANES  # 1024 elements -> rows always multiple of 8
    padded_n = ((n + granule - 1) // granule) * granule
    n_pad = padded_n - n

    xf = jnp.ravel(x)
    yf = jnp.ravel(y)
    if n_pad:
        # Uncommon path (size not a multiple of 1024): small zero pad; padded
        # elements contribute exactly eps each and are corrected below.
        xf = jnp.pad(xf, (0, n_pad))
        yf = jnp.pad(yf, (0, n_pad))

    rows = padded_n // _LANES
    xf = xf.reshape(rows, _LANES)
    yf = yf.reshape(rows, _LANES)

    tile_rows = min(_MAX_TILE_ROWS, rows)     # multiple of 8 by construction
    n_blocks = pl.cdiv(rows, tile_rows)
    needs_mask = (rows % tile_rows) != 0      # trace-time constant

    kernel = functools.partial(
        _charbonnier_sum_kernel,
        eps2=float(eps) * float(eps),
        total_rows=rows,
        needs_mask=needs_mask,
    )

    raw_sum = pl.pallas_call(
        kernel,
        out_shape=jax.ShapeDtypeStruct((1, 1), jnp.float32),
        grid_spec=pltpu.PrefetchScalarGridSpec(
            num_scalar_prefetch=0,
            grid=(n_blocks,),
            in_specs=[
                pl.BlockSpec((tile_rows, _LANES), lambda i: (i, 0)),
                pl.BlockSpec((tile_rows, _LANES), lambda i: (i, 0)),
            ],
            out_specs=pl.BlockSpec(
                (1, 1), lambda i: (0, 0), memory_space=pltpu.SMEM
            ),
            scratch_shapes=[pltpu.VMEM((_SUBLANES, _LANES), jnp.float32)],
        ),
        compiler_params=pltpu.CompilerParams(
            dimension_semantics=("arbitrary",),
        ),
    )(xf, yf)[0, 0]

    # Zero-padded elements contribute sqrt(0 + eps^2) = eps each.
    if n_pad:
        raw_sum = raw_sum - jnp.float32(n_pad) * jnp.float32(eps)
    return raw_sum / jnp.float32(n)


if __name__ == "__main__":
    key = jax.random.PRNGKey(0)
    kx, ky = jax.random.split(key)
    x = jax.random.normal(kx, (2, 4, 16, 16), dtype=jnp.float32)  # NCHW
    y = jax.random.normal(ky, (2, 4, 16, 16), dtype=jnp.float32)  # NCHW

    loss = charbonnier_loss(x, y, eps=1e-3)
    loss = jax.block_until_ready(loss)

    # Pure-JAX reference check.
    ref = jnp.mean(jnp.sqrt((x - y) ** 2 + jnp.float32(1e-3) ** 2))
    assert jnp.allclose(loss, ref, rtol=1e-5, atol=1e-6), (loss, ref)

    print("KERNEL_OK")
</pallas_src>

<mosaic_0001>
module attributes {stable_mosaic.version = 11 : i64} {
  func.func @_charbonnier_sum_kernel(%arg0: i32, %arg1: memref<16x128xf32, #tpu.memory_space<vmem>>, %arg2: memref<16x128xf32, #tpu.memory_space<vmem>>, %arg3: memref<1x1xf32, #tpu.memory_space<smem>>, %arg4: memref<8x128xf32, #tpu.memory_space<vmem>>) attributes {dimension_semantics = [#tpu.dimension_semantics<arbitrary>], iteration_bounds = array<i64: 1>, scalar_prefetch = 0 : i64, scratch_operands = 1 : i64, tpu.core_type = #tpu.core_type<tc>, window_params = [{transform_indices = @transform_0, window_bounds = array<i64: 16, 128>}, {transform_indices = @transform_1, window_bounds = array<i64: 16, 128>}, {transform_indices = @transform_2, window_bounds = array<i64: 1, 1>}]} {
    %c0_i32 = arith.constant 0 : i32
    %0 = arith.cmpi eq, %arg0, %c0_i32 : i32
    %1 = arith.extui %0 : i1 to i32
    %c0_i32_0 = arith.constant 0 : i32
    %2 = arith.cmpi ne, %1, %c0_i32_0 : i32
    scf.if %2 {
      %cst_11 = arith.constant 0.000000e+00 : f32
      %18 = vector.broadcast %cst_11 : f32 to vector<8x128xf32>
      %c0_12 = arith.constant 0 : index
      %c0_13 = arith.constant 0 : index
      %19 = vector.load %arg4[%c0_12, %c0_13] : memref<8x128xf32, #tpu.memory_space<vmem>>, vector<8x128xf32>
      tpu.vector_store %arg4[%c0_12, %c0_13], %18 {strides = array<i32>} : memref<8x128xf32, #tpu.memory_space<vmem>>, vector<8x128xf32>,
    } else {
    }
    %c0 = arith.constant 0 : index
    %c0_1 = arith.constant 0 : index
    %3 = vector.load %arg1[%c0, %c0_1] : memref<16x128xf32, #tpu.memory_space<vmem>>, vector<16x128xf32>
    %c0_2 = arith.constant 0 : index
    %c0_3 = arith.constant 0 : index
    %4 = vector.load %arg2[%c0_2, %c0_3] : memref<16x128xf32, #tpu.memory_space<vmem>>, vector<16x128xf32>
    %5 = arith.subf %3, %4 : vector<16x128xf32>
    %6 = arith.mulf %5, %5 : vector<16x128xf32>
    %cst = arith.constant 9.99999997E-7 : f32
    %7 = vector.broadcast %cst : f32 to vector<16x128xf32>
    %8 = arith.addf %6, %7 : vector<16x128xf32>
    %9 = math.sqrt %8 : vector<16x128xf32>
    %c0_4 = arith.constant 0 : index
    %c0_5 = arith.constant 0 : index
    %10 = vector.load %arg4[%c0_4, %c0_5] : memref<8x128xf32, #tpu.memory_space<vmem>>, vector<8x128xf32>
    %11 = vector.shape_cast %9 : vector<16x128xf32> to vector<2x8x128xf32>
    %cst_6 = arith.constant dense<0.000000e+00> : vector<8x128xf32>
    %12 = vector.multi_reduction <add>, %11, %cst_6 [0] : vector<2x8x128xf32> to vector<8x128xf32>
    %13 = arith.addf %10, %12 : vector<8x128xf32>
    %c0_7 = arith.constant 0 : index
    %c0_8 = arith.constant 0 : index
    %14 = vector.load %arg4[%c0_7, %c0_8] : memref<8x128xf32, #tpu.memory_space<vmem>>, vector<8x128xf32>
    tpu.vector_store %arg4[%c0_7, %c0_8], %13 {strides = array<i32>} : memref<8x128xf32, #tpu.memory_space<vmem>>, vector<8x128xf32>,
    %c0_i32_9 = arith.constant 0 : i32
    %15 = arith.cmpi eq, %arg0, %c0_i32_9 : i32
    %16 = arith.extui %15 : i1 to i32
    %c0_i32_10 = arith.constant 0 : i32
    %17 = arith.cmpi ne, %16, %c0_i32_10 : i32
    scf.if %17 {
      %c0_11 = arith.constant 0 : index
      %c0_12 = arith.constant 0 : index
      %18 = vector.load %arg4[%c0_11, %c0_12] : memref<8x128xf32, #tpu.memory_space<vmem>>, vector<8x128xf32>
      %19 = vector.shape_cast %18 : vector<8x128xf32> to vector<1x8x128xf32>
      %cst_13 = arith.constant dense<0.000000e+00> : vector<1xf32>
      %20 = vector.multi_reduction <add>, %19, %cst_13 [1, 2] : vector<1x8x128xf32> to vector<1xf32>
      %21 = vector.shape_cast %20 : vector<1xf32> to vector<1x1x1xf32>
      %22 = vector.extract %21[0, 0, 0] : f32 from vector<1x1x1xf32>
      %c0_14 = arith.constant 0 : index
      %c0_15 = arith.constant 0 : index
      %23 = memref.load %arg3[%c0_14, %c0_15] : memref<1x1xf32, #tpu.memory_space<smem>>
      memref.store %22, %arg3[%c0_14, %c0_15] : memref<1x1xf32, #tpu.memory_space<smem>>
    } else {
    }
    return
  }
  func.func @transform_0(%arg0: i32) -> (i32, i32) {
    %c0_i32 = arith.constant 0 : i32
    %c0_i32_0 = arith.constant 0 : i32
    return %arg0, %c0_i32 : i32, i32
  }
  func.func @transform_1(%arg0: i32) -> (i32, i32) {
    %c0_i32 = arith.constant 0 : i32
    %c0_i32_0 = arith.constant 0 : i32
    return %arg0, %c0_i32 : i32, i32
  }
  func.func @transform_2(%arg0: i32) -> (i32, i32) {
    %c0_i32 = arith.constant 0 : i32
    %c0_i32_0 = arith.constant 0 : i32
    %c0_i32_1 = arith.constant 0 : i32
    return %c0_i32, %c0_i32_0 : i32, i32
  }
}

</mosaic_0001>

<llo_original>
// kernel: tpu_custom_call.1
$region0: #{tpu_custom_call.1}
  #allocation0 [shape = 'u32[]', space=smem, size = 0x4, offset = 0x4, fixed_abs, tag = 'smem constant byte address 0x4 - core index']
  #allocation1 [shape = 'u32[72,128]{1,0:T(1,128)}', space=vmem, size = 0x9000, scoped, tag = 'internal scratch']
  #allocation2 [shape = 'f32[8,128]{1,0:T(8,128)}', space=vmem, size = 0x1000, scoped, tag = 'scratch operand']
  %s0 = inlined_call_operand.hbm [shape: f32[16,128], index: 0, kind: input, shape index: {}]
  %s1 = inlined_call_operand.hbm [shape: f32[16,128], index: 1, kind: input, shape index: {}]
  %s2 = inlined_call_operand.hbm [shape: f32[1,1], index: 2, kind: output, shape index: {}]
  %s3 = sld [smem:[#allocation0]]
  $region34: #{tpu_custom_call.1} parent=0
    _
  %s5 = ssub.s32 1, %s3
  %s6 = scalar_select 0, %s5, %s3
  $region1: #{tpu_custom_call.1} parent=0
    #allocation3 [shape = 'u8[8192]{0}', space=vmem, size = 0x2000, scoped, tag = 'input window, operand 0, single buffered']
    #allocation4 [shape = 's32[1]{0}', space=sflag, size = 0x4, scoped, tag = 'scoped memory for tpu_custom_call.1']
    #allocation5 [shape = 's32[1]{0}', space=sflag, size = 0x4, scoped, tag = 'scoped memory for tpu_custom_call.1']
    #allocation6 [shape = 'u8[8192]{0}', space=vmem, size = 0x2000, scoped, tag = 'input window, operand 1, single buffered']
    #allocation7 [shape = 's32[1]{0}', space=sflag, size = 0x4, scoped, tag = 'scoped memory for tpu_custom_call.1']
    #allocation8 [shape = 'u8[512]{0}', space=smem, size = 0x200, scoped, tag = 'output window, operand 0, single buffered']
    %7 = vsyncpa [#allocation4], 0
    %8 = vsyncpa [#allocation7], 0
    %9 = vsyncpa [#allocation5], 0
    // Predicated region
    $region2: #{tpu_custom_call.1} parent=1 // pred_check
      _
    $region3: #{tpu_custom_call.1} parent=1 // pred_check_branch
      %11 = sbr.rel (0) target = $region5
    $region4: #{tpu_custom_call.1} parent=1 // pred_region
      %13 = vsyncadd [#allocation4], 0
      %s14 = sshll.u32 %s0, 4
      %s15 = int_to_ptr.hbm [resolvable:$true] %s14
      %s16 = sshll.u32 [#allocation3], 4
      %s17 = int_to_ptr.vmem [resolvable:$true] %s16
      %22 = dma.hbm_to_vmem [thread:$0]  %s15, 256, %s17, [#allocation4], 128, 128, 8
    $region5: #{tpu_custom_call.1} parent=1 // pred_fallthru
      _
    // Predicated region
    $region6: #{tpu_custom_call.1} parent=1 // pred_check
      _
    $region7: #{tpu_custom_call.1} parent=1 // pred_check_branch
      %24 = sbr.rel (0) target = $region9
    $region8: #{tpu_custom_call.1} parent=1 // pred_region
      %26 = vsyncadd [#allocation7], 0
      %s27 = sshll.u32 %s1, 4
      %s28 = int_to_ptr.hbm [resolvable:$true] %s27
      %s29 = sshll.u32 [#allocation6], 4
      %s30 = int_to_ptr.vmem [resolvable:$true] %s29
      %35 = dma.hbm_to_vmem [thread:$0]  %s28, 256, %s30, [#allocation7], 128, 128, 8
    $region9: #{tpu_custom_call.1} parent=1 // pred_fallthru
      _
    // Predicated region
    $region10: #{tpu_custom_call.1} parent=1 // pred_check
      _
    $region11: #{tpu_custom_call.1} parent=1 // pred_check_branch
      %37 = sbr.rel (0) target = $region13
    $region12: #{tpu_custom_call.1} parent=1 // pred_region
      %39 = dma.done [#allocation4], 256
    $region13: #{tpu_custom_call.1} parent=1 // pred_fallthru
      _
    // Predicated region
    $region14: #{tpu_custom_call.1} parent=1 // pred_check
      _
    $region15: #{tpu_custom_call.1} parent=1 // pred_check_branch
      %41 = sbr.rel (0) target = $region17
    $region16: #{tpu_custom_call.1} parent=1 // pred_region
      %43 = dma.done [#allocation7], 256
    $region17: #{tpu_custom_call.1} parent=1 // pred_fallthru
      _
    %p44 = scmp.eq.s32.totalorder 0, 0
    // Predicated region
    $region18: #{tpu_custom_call.1} parent=1 // pred_check
      %p45 = pneg %p44
    $region19: #{tpu_custom_call.1} parent=1 // pred_check_branch
      %47 = sbr.rel (%p45) target = $region21
    $region20: #{tpu_custom_call.1} parent=1 // pred_region
      %48 = vst [vmem:[#allocation2] sm:$0xff] 0.0
    $region21: #{tpu_custom_call.1} parent=1 // pred_fallthru
      _
    %v49 = vld [vmem:[#allocation3] sm:$0xff]
    %v50 = vld [vmem:[#allocation3 + $0x8] sm:$0xff]
    %v51 = vld [vmem:[#allocation6] sm:$0xff]
    %v52 = vld [vmem:[#allocation6 + $0x8] sm:$0xff]
    %v53 = vsub.f32 %v49, %v51
    %v54 = vsub.f32 %v50, %v52
    %v55 = vmul.f32 %v53, %v53
    %v56 = vmul.f32 %v54, %v54
    %v57 = vadd.f32 %v55, 1e-06
    %v58 = vadd.f32 %v56, 1e-06
    %v59 = vrsqrt.pop %v57
    %v60 = vmul.f32 %v59, %v57
    %v61 = vmul.f32 %v60, %v59
    %v62 = vmul.f32 0.5, %v61
    %v63 = vsub.f32 1.5, %v62
    %v64 = vmul.f32 %v59, %v63
    %v65 = vmul.f32 %v57, %v64
    %vm66 = vcmp.eq.f32.partialorder %v57, inf
    %v67 = vsel %vm66, %v57, %v65
    %vm68 = vcmp.eq.f32.partialorder %v57, 0.0
    %v69 = vand.u32 %v57, 2147483648
    %v70 = vsel %vm68, %v69, %v67
    %v71 = vrsqrt.pop %v58
    %v72 = vmul.f32 %v71, %v58
    %v73 = vmul.f32 %v72, %v71
    %v74 = vmul.f32 0.5, %v73
    %v75 = vsub.f32 1.5, %v74
    %v76 = vmul.f32 %v71, %v75
    %v77 = vmul.f32 %v58, %v76
    %vm78 = vcmp.eq.f32.partialorder %v58, inf
    %v79 = vsel %vm78, %v58, %v77
    %vm80 = vcmp.eq.f32.partialorder %v58, 0.0
    %v81 = vand.u32 %v58, 2147483648
    %v82 = vsel %vm80, %v81, %v79
    %v83 = vld [vmem:[#allocation2] sm:$0xff]
    %v84 = vadd.f32 %v70, %v82
    %v85 = vadd.f32 %v83, %v84
    %86 = vst [vmem:[#allocation2] sm:$0xff] %v85
    // Predicated region
    $region22: #{tpu_custom_call.1} parent=1 // pred_check
      %p87 = pneg %p44
    $region23: #{tpu_custom_call.1} parent=1 // pred_check_branch
      %89 = sbr.rel (%p87) target = $region25
    $region24: #{tpu_custom_call.1} parent=1 // pred_region
      %v90 = vld [vmem:[#allocation2] sm:$0xff]
      %91 = vadd.xlane.f32.xlu0 %v90
      %v92 = vpop.xlane.xlu0 %91
      %v93 = vrot.slane %v92, 4
      %v94 = vadd.f32 %v92, %v93
      %v95 = vrot.slane %v94, 2
      %v96 = vadd.f32 %v94, %v95
      %v97 = vrot.slane %v96, 1
      %v98 = vadd.f32 %v96, %v97
      %s99 = vtos %v98
      %s100 = scalar_lea.smem [#allocation8], 0
      %101 = sst [smem:[%s100]] %s99
    $region25: #{tpu_custom_call.1} parent=1 // pred_fallthru
      _
    // Predicated region
    $region26: #{tpu_custom_call.1} parent=1 // pred_check
      _
    $region27: #{tpu_custom_call.1} parent=1 // pred_check_branch
      %103 = sbr.rel (0) target = $region29
    $region28: #{tpu_custom_call.1} parent=1 // pred_region
      %105 = vsyncadd [#allocation5], 0
      %s107 = sshll.u32 %s2, 4
      %s108 = int_to_ptr.hbm [resolvable:$true] %s107
      %110 = dma.smem_to_hbm [#allocation8], 16, %s108, [#allocation5]
    $region29: #{tpu_custom_call.1} parent=1 // pred_fallthru
      _
    // Predicated region
    $region30: #{tpu_custom_call.1} parent=1 // pred_check
      _
    $region31: #{tpu_custom_call.1} parent=1 // pred_check_branch
      %112 = sbr.rel (0) target = $region33
    $region32: #{tpu_custom_call.1} parent=1 // pred_region
      %114 = dma.done [#allocation5], 16
    $region33: #{tpu_custom_call.1} parent=1 // pred_fallthru
      _
    %115 = sfence
    %116 = vsyncpa [#allocation4], 1
    %117 = vsyncpa [#allocation7], 1
    %118 = vsyncpa [#allocation5], 1

</llo_original>
